<compile_context>
chip_gen: v6e
topology: v6e:2x2x1
jax: 0.10.0
libtpu: 0.0.40
codegen_flags: <defaults>
</compile_context>

<pallas_src>
import math

import jax
import jax.numpy as jnp
from jax.experimental import pallas as pl
from jax.experimental.pallas import tpu as pltpu


def _build_pe(d_model: int, max_len: int) -> jnp.ndarray:
    """Sinusoidal positional-encoding table, shape (max_len, d_model). Odd-d_model safe."""
    position = jnp.arange(0, max_len, dtype=jnp.float32)[:, None]            # (max_len, 1)
    div_term = jnp.exp(
        jnp.arange(0, d_model, 2, dtype=jnp.float32) * (-math.log(10000.0) / d_model)
    )                                                                         # (ceil(d/2),)
    ang = position * div_term                                                 # (max_len, ceil(d/2))
    pe = jnp.zeros((max_len, d_model), dtype=jnp.float32)
    pe = pe.at[:, 0::2].set(jnp.sin(ang))
    pe = pe.at[:, 1::2].set(jnp.cos(ang)[:, : d_model // 2])                  # guard odd d_model
    return pe


def prepare_pe(pe: jnp.ndarray, seq_len: int, dtype) -> jnp.ndarray:
    """Slice + cast the table once per (seq_len, dtype); cache and pass to forward()."""
    return pe[:seq_len, :].astype(dtype)


def _add_pe_kernel(x_ref, pe_ref, o_ref):
    # Works for both paths:
    #   3-D: x/o (1, tS, D), pe (tS, D)   -> broadcast over leading batch dim.
    #   2-D: x/o (tB, tC),   pe (1, tC)   -> broadcast over sublane (batch) axis.
    o_ref[...] = x_ref[...] + pe_ref[...]


def positional_encoding_forward(
    x: jnp.ndarray,
    pe: jnp.ndarray,
    *,
    target_block_bytes: int = 2 << 20,     # ~2 MiB blocks: >=85% of HBM roofline,
                                            # double-buffered footprint safe on v5e default VMEM
    donate_x: bool = True,                  # alias x's buffer for the output (XLA copies if x is live)
    small_bailout_bytes: int = 256 << 10,   # below this, plain fused add beats kernel overhead
) -> jnp.ndarray:
    """x: (B, S, D); pe: (max_len, D) or pre-prepared (S, D). Returns x + pe[None, :S, :]."""
    B, S, D = x.shape
    itemsize = jnp.dtype(x.dtype).itemsize

    # Hoisted pe prep: if the caller already passed a (S, D) dtype-matched table, use it as-is.
    pe_s = pe if (pe.shape[0] == S and pe.dtype == x.dtype) else prepare_pe(pe, S, x.dtype)

    # Tiny-input bailout: avoid pallas_call + reshape fixed overhead.
    if B * S * D * itemsize <= small_bailout_bytes:
        return x + pe_s[None, :, :]

    io_alias = {0: 0} if donate_x else {}
    comp = pltpu.CompilerParams(dimension_semantics=("parallel", "parallel"))

    if D % 128 == 0:
        # ---- layout-preserving 3-D path: no reshapes, lane-dense, >=8 live sublanes ----
        rows_budget = max(8, target_block_bytes // (D * itemsize))
        t_s = S if S <= rows_budget else max(8, (rows_budget // 8) * 8)
        n_s = pl.cdiv(S, t_s)
        grid = (n_s, B)  # batch innermost: pe block index unchanged -> Pallas skips pe re-DMA

        return pl.pallas_call(
            _add_pe_kernel,
            out_shape=jax.ShapeDtypeStruct((B, S, D), x.dtype),
            grid_spec=pltpu.PrefetchScalarGridSpec(
                num_scalar_prefetch=0,
                grid=grid,
                in_specs=[
                    pl.BlockSpec((1, t_s, D), lambda s, b: (b, s, 0)),   # x tile
                    pl.BlockSpec((t_s, D), lambda s, b: (s, 0)),         # pe: seq tile only
                ],
                out_specs=pl.BlockSpec((1, t_s, D), lambda s, b: (b, s, 0)),
            ),
            compiler_params=comp,
            input_output_aliases=io_alias,
        )(x, pe_s)

    # ---- fallback path (D not a multiple of 128): flatten (S, D) for lane density ----
    total = S * D
    x2 = x.reshape(B, total)
    pe_flat = pe_s.reshape(1, total)

    # Favor lane extent: cap sublane rows, grow column width in multiples of 128.
    t_b = B if B <= 64 else 64                                   # full-B or multiple of 8
    cols_budget = max(128, (target_block_bytes // (t_b * itemsize)) // 128 * 128)
    t_c = total if total <= cols_budget else cols_budget
    grid = (pl.cdiv(total, t_c), pl.cdiv(B, t_b))                # batch innermost (pe reuse)

    out2 = pl.pallas_call(
        _add_pe_kernel,
        out_shape=jax.ShapeDtypeStruct((B, total), x.dtype),
        grid_spec=pltpu.PrefetchScalarGridSpec(
            num_scalar_prefetch=0,
            grid=grid,
            in_specs=[
                pl.BlockSpec((t_b, t_c), lambda c, b: (b, c)),   # x tile
                pl.BlockSpec((1, t_c), lambda c, b: (0, c)),     # pe: column tile only
            ],
            out_specs=pl.BlockSpec((t_b, t_c), lambda c, b: (b, c)),
        ),
        compiler_params=comp,
        input_output_aliases=io_alias,
    )(x2, pe_flat)
    return out2.reshape(B, S, D)


if __name__ == "__main__":
    d_model = 32
    max_len = 5000
    batch = 2
    seq_len = 8

    key = jax.random.PRNGKey(0)
    k1, k2, k3 = jax.random.split(key, 3)

    # 1) Module-scale demo (B=2, S=8, D=32): force the kernel (flatten fallback) path.
    pe_small = _build_pe(d_model, max_len)
    pe_small_s = prepare_pe(pe_small, seq_len, jnp.float32)      # hoisted pe prep
    x_a = jax.random.normal(k1, (batch, seq_len, d_model), dtype=jnp.float32)
    ref_a = x_a + pe_small_s[None, :, :]
    out_a = jax.block_until_ready(
        positional_encoding_forward(x_a, pe_small_s, small_bailout_bytes=0))
    assert out_a.shape == (batch, seq_len, d_model)
    assert jnp.allclose(out_a, ref_a, atol=1e-6), "mismatch vs reference (flatten path)"

    # 2) Same tiny shape through the default small-tensor bailout (pure JAX fused add).
    x_b = jax.random.normal(k2, (batch, seq_len, d_model), dtype=jnp.float32)
    ref_b = x_b + pe_small_s[None, :, :]
    out_b = jax.block_until_ready(positional_encoding_forward(x_b, pe_small))
    assert jnp.allclose(out_b, ref_b, atol=1e-6), "mismatch vs reference (bailout path)"

    # 3) Lane-aligned D (D % 128 == 0): 3-D no-reshape path, multiple seq tiles,
    #    pe block reused across the inner batch steps.
    S2, D2 = 256, 256
    pe_big = _build_pe(D2, max_len)
    pe_big_s = prepare_pe(pe_big, S2, jnp.float32)
    x_c = jax.random.normal(k3, (batch, S2, D2), dtype=jnp.float32)
    ref_c = x_c + pe_big_s[None, :, :]
    out_c = jax.block_until_ready(
        positional_encoding_forward(x_c, pe_big_s, target_block_bytes=128 << 10))
    assert jnp.allclose(out_c, ref_c, atol=1e-6), "mismatch vs reference (3-D path)"

    print("KERNEL_OK")
</pallas_src>

<mosaic_0001>
module attributes {stable_mosaic.version = 11 : i64} {
  func.func @_add_pe_kernel(%arg0: i32, %arg1: i32, %arg2: memref<2x256xf32, #tpu.memory_space<vmem>>, %arg3: memref<1x256xf32, #tpu.memory_space<vmem>>, %arg4: memref<2x256xf32, #tpu.memory_space<vmem>>) attributes {dimension_semantics = [#tpu.dimension_semantics<parallel>, #tpu.dimension_semantics<parallel>], iteration_bounds = array<i64: 1, 1>, scalar_prefetch = 0 : i64, scratch_operands = 0 : i64, tpu.core_type = #tpu.core_type<tc>, window_params = [{transform_indices = @transform_0, window_bounds = array<i64: 2, 256>}, {transform_indices = @transform_1, window_bounds = array<i64: 1, 256>}, {transform_indices = @transform_2, window_bounds = array<i64: 2, 256>}]} {
    %c0 = arith.constant 0 : index
    %c0_0 = arith.constant 0 : index
    %0 = vector.load %arg2[%c0, %c0_0] : memref<2x256xf32, #tpu.memory_space<vmem>>, vector<2x256xf32>
    %c0_1 = arith.constant 0 : index
    %c0_2 = arith.constant 0 : index
    %1 = vector.load %arg3[%c0_1, %c0_2] : memref<1x256xf32, #tpu.memory_space<vmem>>, vector<1x256xf32>
    %2 = vector.broadcast %1 : vector<1x256xf32> to vector<2x256xf32>
    %3 = arith.addf %0, %2 : vector<2x256xf32>
    %c0_3 = arith.constant 0 : index
    %c0_4 = arith.constant 0 : index
    %4 = vector.load %arg4[%c0_3, %c0_4] : memref<2x256xf32, #tpu.memory_space<vmem>>, vector<2x256xf32>
    tpu.vector_store %arg4[%c0_3, %c0_4], %3 {strides = array<i32>} : memref<2x256xf32, #tpu.memory_space<vmem>>, vector<2x256xf32>,
    return
  }
  func.func @transform_0(%arg0: i32, %arg1: i32) -> (i32, i32) {
    %c0_i32 = arith.constant 0 : i32
    return %arg1, %arg0 : i32, i32
  }
  func.func @transform_1(%arg0: i32, %arg1: i32) -> (i32, i32) {
    %c0_i32 = arith.constant 0 : i32
    %c0_i32_0 = arith.constant 0 : i32
    return %c0_i32, %arg0 : i32, i32
  }
  func.func @transform_2(%arg0: i32, %arg1: i32) -> (i32, i32) {
    %c0_i32 = arith.constant 0 : i32
    return %arg1, %arg0 : i32, i32
  }
}

</mosaic_0001>

<llo_original>
// kernel: tpu_custom_call.1
$region0: #{tpu_custom_call.1}
  #allocation0 [shape = 'u32[]', space=smem, size = 0x4, offset = 0x4, fixed_abs, tag = 'smem constant byte address 0x4 - core index']
  #allocation1 [shape = 'u32[144,128]{1,0:T(1,128)}', space=vmem, size = 0x12000, scoped, tag = 'internal scratch']
  %s0 = inlined_call_operand.hbm [shape: f32[2,256], index: 0, kind: input, shape index: {}, may-alias: {0,2}]
  %s1 = inlined_call_operand.vmem [shape: f32[1,256], index: 1, kind: input, shape index: {}]
  %s2 = inlined_call_operand.hbm [shape: f32[2,256], index: 2, kind: output, shape index: {}, may-alias: {0,2}]
  %s3 = sld [smem:[#allocation0]]
  $region22: #{tpu_custom_call.1} parent=0
    _
  %s5 = ssub.s32 1, %s3
  %s6 = scalar_select 0, %s5, %s3
  $region1: #{tpu_custom_call.1} parent=0
    #allocation2 [shape = 'u8[2048]{0}', space=vmem, size = 0x800, scoped, tag = 'input window, operand 0, single buffered']
    #allocation3 [shape = 's32[1]{0}', space=sflag, size = 0x4, scoped, tag = 'scoped memory for tpu_custom_call.1']
    #allocation4 [shape = 's32[1]{0}', space=sflag, size = 0x4, scoped, tag = 'scoped memory for tpu_custom_call.1']
    #allocation5 [shape = 'u8[2048]{0}', space=vmem, size = 0x800, scoped, tag = 'output window, operand 0, single buffered']
    %7 = vsyncpa [#allocation3], 0
    %8 = vsyncpa [#allocation4], 0
    // Predicated region
    $region2: #{tpu_custom_call.1} parent=1 // pred_check
      _
    $region3: #{tpu_custom_call.1} parent=1 // pred_check_branch
      %10 = sbr.rel (0) target = $region5
    $region4: #{tpu_custom_call.1} parent=1 // pred_region
      %s12 = ssub.s32 64, 64
      %13 = vsyncadd [#allocation3], %s12
      %s15 = sshll.u32 [#allocation2], 4
      %s16 = int_to_ptr.vmem [resolvable:$true] %s15
      %18 = dma.hbm_to_vmem [thread:$0]  %s0, 64, %s16, [#allocation3]
    $region5: #{tpu_custom_call.1} parent=1 // pred_fallthru
      _
    // Predicated region
    $region6: #{tpu_custom_call.1} parent=1 // pred_check
      _
    $region7: #{tpu_custom_call.1} parent=1 // pred_check_branch
      %20 = sbr.rel (0) target = $region9
    $region8: #{tpu_custom_call.1} parent=1 // pred_region
      _
    $region9: #{tpu_custom_call.1} parent=1 // pred_fallthru
      _
    // Predicated region
    $region10: #{tpu_custom_call.1} parent=1 // pred_check
      _
    $region11: #{tpu_custom_call.1} parent=1 // pred_check_branch
      %22 = sbr.rel (0) target = $region13
    $region12: #{tpu_custom_call.1} parent=1 // pred_region
      %23 = dma.done [#allocation3], 64
    $region13: #{tpu_custom_call.1} parent=1 // pred_fallthru
      _
    %v24 = vld [vmem:[#allocation2] sm:$0xf]
    %v25 = vld [vmem:[%s1] sm:$0x3]
    %v27 = vlaneseq
    %v28 = vshrl.u32 %v27, 7
    %v29 = vsub.s32 0, %v28
    %v30 = vrot.slane %v25, %v29
    %v31 = vlaneseq
    %v32 = vshrl.u32 %v31, 7
    %v33 = vsub.s32 1, %v32
    %v34 = vrot.slane %v25, %v33
    %v35 = vcombine.low %v30, %v34
    %v37 = vunpack.c.l.s4 1983009808
    %v38 = vunpack.c.0.s8 %v37
    %v39 = vlaneseq
    %v40 = vshrl.u32 %v39, 7
    %v41 = vsub.s32 %v38, %v40
    %v42 = vrot.slane %v35, %v41
    %v44 = vadd.f32 %v24, %v42
    %45 = vst [vmem:[#allocation5] sm:$0xf] %v44
    // Predicated region
    $region14: #{tpu_custom_call.1} parent=1 // pred_check
      _
    $region15: #{tpu_custom_call.1} parent=1 // pred_check_branch
      %47 = sbr.rel (0) target = $region17
    $region16: #{tpu_custom_call.1} parent=1 // pred_region
      %s49 = ssub.s32 64, 64
      %50 = vsyncadd [#allocation4], %s49
      %s52 = sshll.u32 [#allocation5], 4
      %s53 = int_to_ptr.vmem [resolvable:$true] %s52
      %55 = dma.vmem_to_hbm [thread:$0]  %s53, 64, %s2, [#allocation4]
    $region17: #{tpu_custom_call.1} parent=1 // pred_fallthru
      _
    // Predicated region
    $region18: #{tpu_custom_call.1} parent=1 // pred_check
      _
    $region19: #{tpu_custom_call.1} parent=1 // pred_check_branch
      %57 = sbr.rel (0) target = $region21
    $region20: #{tpu_custom_call.1} parent=1 // pred_region
      %58 = dma.done [#allocation4], 64
    $region21: #{tpu_custom_call.1} parent=1 // pred_fallthru
      _
    %59 = vsyncpa [#allocation3], 1
    %60 = vsyncpa [#allocation4], 1

</llo_original>
